<compile_context>
chip_gen: v5e
topology: v5e:2x2
jax: 0.10.0
libtpu: 0.0.40
codegen_flags: <defaults>
</compile_context>

<pallas_src>
import functools
import math

import jax
import jax.numpy as jnp
from jax.experimental import pallas as pl
from jax.experimental.pallas import tpu as pltpu


# ---------------------------------------------------------------------------
# Helpers
# ---------------------------------------------------------------------------
def _round_up(x, m):
    return (x + m - 1) // m * m


def _pick_lane_tile(dim, pref):
    """Largest 128-aligned tile <= pref that divides dim, else the full dim.
    (d_model is either small enough to take whole, or a multiple of 128.)"""
    if dim <= pref:
        return dim
    t = (pref // 128) * 128
    while t >= 128:
        if dim % t == 0:
            return t
        t -= 128
    return dim


def _compiler_params(semantics, working_bytes):
    # Leave headroom below v7x's 64 MiB physical VMEM for compiler scratch.
    limit = int(min(56 * 1024 * 1024, max(32 * 1024 * 1024, 3 * working_bytes)))
    return pltpu.CompilerParams(dimension_semantics=semantics,
                                vmem_limit_bytes=limit)


# ---------------------------------------------------------------------------
# Tiled matmul kernel (bias-free Linear: y = x @ W), f32 accumulation directly
# into the resident output block (no scratch accumulator).
# ---------------------------------------------------------------------------
def _matmul_kernel(a_ref, b_ref, o_ref):
    @pl.when(pl.program_id(2) == 0)
    def _():
        o_ref[...] = jnp.zeros_like(o_ref)

    o_ref[...] += jnp.dot(a_ref[...], b_ref[...],
                          preferred_element_type=jnp.float32)


def pallas_matmul(a, b, *, tm_max=256, tn_max=256, tk_max=512):
    """a: (M, K), b: (K, N) -> (M, N) float32.  M is padded (and sliced back)
    so the row tile is always sublane-aligned and VMEM-bounded."""
    M, K = a.shape
    K2, N = b.shape
    assert K == K2

    if M <= tm_max:
        tm = _round_up(M, 8)
        Mp = tm
    else:
        tm = tm_max
        Mp = _round_up(M, tm)
    if Mp != M:
        a = jnp.pad(a, ((0, Mp - M), (0, 0)))

    tk = _pick_lane_tile(K, tk_max)
    tn = _pick_lane_tile(N, tn_max)
    grid = (Mp // tm, N // tn, K // tk)

    itemsize = jnp.dtype(a.dtype).itemsize
    work = itemsize * (tm * tk + tk * tn) + 4 * tm * tn
    cost = pl.CostEstimate(
        flops=2 * Mp * N * K, transcendentals=0,
        bytes_accessed=itemsize * (Mp * K + K * N) + 4 * Mp * N)

    out = pl.pallas_call(
        _matmul_kernel,
        out_shape=jax.ShapeDtypeStruct((Mp, N), jnp.float32),
        grid_spec=pltpu.PrefetchScalarGridSpec(
            num_scalar_prefetch=0,
            grid=grid,
            in_specs=[
                pl.BlockSpec((tm, tk), lambda i, j, k: (i, k)),
                pl.BlockSpec((tk, tn), lambda i, j, k: (k, j)),
            ],
            out_specs=pl.BlockSpec((tm, tn), lambda i, j, k: (i, j)),
        ),
        compiler_params=_compiler_params(("parallel", "parallel", "arbitrary"),
                                         2 * work),
        cost_estimate=cost,
    )(a, b)
    return out[:M] if Mp != M else out


# ---------------------------------------------------------------------------
# Flash-style attention kernel.
# Grid: (batch, Sq-tiles, kv-tiles).  Each step loads a (tq, D) q slab, a
# (tk, D) k/v slab and one (tq, tk) int8 mask tile (shared by ALL heads), and
# runs the per-head online-softmax update.  Output is a lane-dense (tq, D)
# slab -> the merge-heads transpose disappears.
# Mask semantics match torch: masked_fill(mask == 0, -1e9).
# ---------------------------------------------------------------------------
def _attention_kernel(*refs, num_heads, d_k, scale, compute_dtype, has_mask):
    if has_mask:
        q_ref, k_ref, v_ref, mask_ref, o_ref, m_sc, l_sc, acc_sc = refs
    else:
        q_ref, k_ref, v_ref, o_ref, m_sc, l_sc, acc_sc = refs
        mask_ref = None

    kv = pl.program_id(2)

    @pl.when(kv == 0)
    def _():
        m_sc[...] = jnp.full_like(m_sc, -jnp.inf)
        l_sc[...] = jnp.zeros_like(l_sc)
        acc_sc[...] = jnp.zeros_like(acc_sc)

    if mask_ref is not None:
        neg = mask_ref[...] == 0                      # (tq, tk), shared by heads

    # Static (unrolled) loop over heads; each head is a static lane slice of the
    # (tile, d_model) slabs -- no HBM-level head split/merge transposes.
    # TODO(synk): with d_k < 128 each Q.K^T / P.V only part-fills the 256-wide
    # MXU; packing 2 heads per matmul is a further (unapplied) optimization.
    for h in range(num_heads):
        lo, hi = h * d_k, (h + 1) * d_k
        # Fold 1/sqrt(d_k) into the (tq, d_k) q slice (cheaper than scaling s).
        q_h = (q_ref[:, lo:hi] * scale).astype(compute_dtype)
        k_h = k_ref[:, lo:hi].astype(compute_dtype)
        v_h = v_ref[:, lo:hi].astype(compute_dtype)

        # scores = (q/sqrt(d_k)) @ k^T   -- NT matmul contracting the head dim.
        s = jax.lax.dot_general(q_h, k_h, (((1,), (1,)), ((), ())),
                                preferred_element_type=jnp.float32)
        if mask_ref is not None:
            s = jnp.where(neg, -1e9, s)

        m_prev = m_sc[h]                              # (tq, 1)
        m_new = jnp.maximum(m_prev, s.max(axis=-1, keepdims=True))
        alpha = jnp.exp(m_prev - m_new)
        p = jnp.exp(s - m_new)
        l_sc[h] = alpha * l_sc[h] + p.sum(axis=-1, keepdims=True)
        acc_sc[h] = alpha * acc_sc[h] + jnp.dot(
            p.astype(compute_dtype), v_h, preferred_element_type=jnp.float32)
        m_sc[h] = m_new

    @pl.when(kv == pl.num_programs(2) - 1)
    def _():
        for h in range(num_heads):
            inv_l = pl.reciprocal(l_sc[h], approx=True)   # EUP slot, frees VPU
            o_ref[:, h * d_k:(h + 1) * d_k] = (acc_sc[h] * inv_l).astype(o_ref.dtype)


def pallas_attention(q, k, v, mask, num_heads, *, compute_dtype=jnp.bfloat16,
                     tq_max=256, tk_max=512):
    """q: (B, Sq, D), k/v: (B, Sk, D), mask: (B, Sq, Sk) int8 or None.
    Returns (B, Sq, D) with heads already merged (lane-dense D = H*d_k)."""
    B, Sq, D = q.shape
    Sk = k.shape[1]
    assert D % num_heads == 0
    d_k = D // num_heads
    scale = 1.0 / math.sqrt(d_k)
    itemsize = jnp.dtype(q.dtype).itemsize

    # Tile caps from a VMEM budget (blocks carry all heads: (tile, D)).
    row_bytes = max(1, D * itemsize)
    tk_cap = max(128, min(tk_max, ((4 << 20) // row_bytes) // 128 * 128))
    tq_cap = max(64, min(tq_max, ((2 << 20) // row_bytes) // 64 * 64))

    if Sq <= tq_cap:
        tq = _round_up(Sq, 8)
        Sqp = tq
    else:
        tq = tq_cap
        Sqp = _round_up(Sq, tq)
    if Sk <= tk_cap:
        tk = Sk
        Skp = Sk
    else:
        tk = tk_cap
        Skp = _round_up(Sk, tk)

    pad_q, pad_k = Sqp - Sq, Skp - Sk
    if pad_q:
        q = jnp.pad(q, ((0, 0), (0, pad_q), (0, 0)))
    if pad_k:
        k = jnp.pad(k, ((0, 0), (0, pad_k), (0, 0)))
        v = jnp.pad(v, ((0, 0), (0, pad_k), (0, 0)))
    if mask is None and pad_k:
        # Padded keys must not contribute: key-validity mask (0 == masked).
        mask = jnp.broadcast_to(
            (jnp.arange(Skp) < Sk).astype(jnp.int8)[None, None, :], (B, Sqp, Skp))
    elif mask is not None and (pad_q or pad_k):
        mask = jnp.pad(mask, ((0, 0), (0, pad_q), (0, pad_k)))
    has_mask = mask is not None

    kernel = functools.partial(
        _attention_kernel, num_heads=num_heads, d_k=d_k, scale=scale,
        compute_dtype=compute_dtype, has_mask=has_mask)

    grid = (B, Sqp // tq, Skp // tk)
    in_specs = [
        pl.BlockSpec((None, tq, D), lambda b, qi, kv: (b, qi, 0)),
        pl.BlockSpec((None, tk, D), lambda b, qi, kv: (b, kv, 0)),
        pl.BlockSpec((None, tk, D), lambda b, qi, kv: (b, kv, 0)),
    ]
    inputs = [q, k, v]
    if has_mask:
        in_specs.append(pl.BlockSpec((None, tq, tk), lambda b, qi, kv: (b, qi, kv)))
        inputs.append(mask)

    work = itemsize * (2 * tq * D + 2 * tk * D) + tq * tk \
           + 4 * num_heads * tq * (d_k + 2)
    cost = pl.CostEstimate(
        flops=4 * B * Sqp * Skp * D,
        transcendentals=B * num_heads * Sqp * Skp,
        bytes_accessed=itemsize * (2 * B * Sqp * D + 2 * B * Skp * D)
        + (B * Sqp * Skp if has_mask else 0))

    out = pl.pallas_call(
        kernel,
        out_shape=jax.ShapeDtypeStruct((B, Sqp, D), q.dtype),
        grid_spec=pltpu.PrefetchScalarGridSpec(
            num_scalar_prefetch=0,
            grid=grid,
            in_specs=in_specs,
            out_specs=pl.BlockSpec((None, tq, D), lambda b, qi, kv: (b, qi, 0)),
            scratch_shapes=[
                pltpu.VMEM((num_heads, tq, 1), jnp.float32),    # running max
                pltpu.VMEM((num_heads, tq, 1), jnp.float32),    # running denom
                pltpu.VMEM((num_heads, tq, d_k), jnp.float32),  # output accum
            ],
        ),
        compiler_params=_compiler_params(("parallel", "parallel", "arbitrary"),
                                         2 * work),
        cost_estimate=cost,
    )(*inputs)
    if pad_q:
        out = out[:, :Sq]
    return out


# ---------------------------------------------------------------------------
# Full module forward
# ---------------------------------------------------------------------------
def _prepare_mask(mask, B, Sq, Sk):
    if mask is None:
        return None
    m = jnp.asarray(mask)
    if m.ndim == 4:
        # (B|1, 1, Sq, Sk): head-invariant masks (padding / causal).
        if m.shape[1] != 1:
            # TODO(synk): per-head attention masks are not supported by the
            # fused kernel (the mask tile is shared across heads).
            raise NotImplementedError("per-head attention masks not supported")
        m = m[:, 0]
    m = jnp.broadcast_to(m, (B, Sq, Sk))
    return (m != 0).astype(jnp.int8)        # int8: 4x less HBM traffic vs int32


def multi_head_attention_block(q, k, v, mask, w_q, w_k, w_v, w_o, num_heads,
                               dropout_rate=0.0):
    """Forward pass of MultiHeadAttentionBlock.  Weights are (d_model, d_model)
    in JAX convention (y = x @ W, i.e. transpose of torch Linear weight)."""
    B, Sq, D = q.shape
    Sk = k.shape[1]
    assert D % num_heads == 0, "d_model is not divisible by h"

    query = pallas_matmul(q.reshape(B * Sq, D), w_q).reshape(B, Sq, D)
    key = pallas_matmul(k.reshape(B * Sk, D), w_k).reshape(B, Sk, D)
    value = pallas_matmul(v.reshape(B * Sk, D), w_v).reshape(B, Sk, D)

    mask3 = _prepare_mask(mask, B, Sq, Sk)

    # TODO(synk): training-mode dropout on attention probabilities is not
    # implemented (forward is evaluated with dropout disabled, i.e. eval()).
    # TODO(synk): self.attention_scores is not materialized — the online-softmax
    # kernel never forms the full (Sq, Sk) probability matrix.
    del dropout_rate

    # Heads are indexed inside the kernel; no split/merge transposes needed.
    attn = pallas_attention(query, key, value, mask3, num_heads)   # (B, Sq, D)

    out = pallas_matmul(attn.reshape(B * Sq, D), w_o)
    return out.reshape(B, Sq, D)


# ---------------------------------------------------------------------------
# Demo + correctness check
# ---------------------------------------------------------------------------
if __name__ == "__main__":
    key = jax.random.PRNGKey(0)
    batch, seq, d_model, n_heads = 2, 8, 32, 4
    kq, kk, kv_, kwq, kwk, kwv, kwo = jax.random.split(key, 7)

    q = jax.random.normal(kq, (batch, seq, d_model), dtype=jnp.float32)
    k = jax.random.normal(kk, (batch, seq, d_model), dtype=jnp.float32)
    v = jax.random.normal(kv_, (batch, seq, d_model), dtype=jnp.float32)

    w_scale = 1.0 / math.sqrt(d_model)
    w_q = jax.random.normal(kwq, (d_model, d_model), jnp.float32) * w_scale
    w_k = jax.random.normal(kwk, (d_model, d_model), jnp.float32) * w_scale
    w_v = jax.random.normal(kwv, (d_model, d_model), jnp.float32) * w_scale
    w_o = jax.random.normal(kwo, (d_model, d_model), jnp.float32) * w_scale

    # Causal mask, broadcast over batch & heads (mask == 0 gets -1e9).
    mask = jnp.tril(jnp.ones((seq, seq), jnp.int32))[None, None]

    out = multi_head_attention_block(q, k, v, mask, w_q, w_k, w_v, w_o, n_heads)
    out = jax.block_until_ready(out)

    # Pure-JAX reference (high-precision matmuls).
    d_k = d_model // n_heads
    hp = "highest"
    Q = jnp.matmul(q, w_q, precision=hp).reshape(batch, seq, n_heads, d_k).transpose(0, 2, 1, 3)
    K = jnp.matmul(k, w_k, precision=hp).reshape(batch, seq, n_heads, d_k).transpose(0, 2, 1, 3)
    V = jnp.matmul(v, w_v, precision=hp).reshape(batch, seq, n_heads, d_k).transpose(0, 2, 1, 3)
    s = jnp.einsum("bhqd,bhkd->bhqk", Q, K, precision=hp) / math.sqrt(d_k)
    s = jnp.where(mask == 0, -1e9, s)
    p = jax.nn.softmax(s, axis=-1)
    o = jnp.einsum("bhqk,bhkd->bhqd", p, V, precision=hp)
    o = o.transpose(0, 2, 1, 3).reshape(batch, seq, d_model)
    ref = jnp.matmul(o, w_o, precision=hp)

    max_err = jnp.max(jnp.abs(out - ref))
    assert out.shape == ref.shape
    # Tolerance accounts for bf16 MXU matmuls (QK^T / PV) + approx reciprocal.
    assert jnp.allclose(out, ref, atol=5e-2, rtol=5e-2), f"mismatch vs reference: {max_err}"
    print("KERNEL_OK")
</pallas_src>

<mosaic_0001>
module attributes {stable_mosaic.version = 11 : i64} {
  func.func @_matmul_kernel(%arg0: i32, %arg1: i32, %arg2: i32, %arg3: memref<16x32xf32, #tpu.memory_space<vmem>>, %arg4: memref<32x32xf32, #tpu.memory_space<vmem>>, %arg5: memref<16x32xf32, #tpu.memory_space<vmem>>) attributes {dimension_semantics = [#tpu.dimension_semantics<parallel>, #tpu.dimension_semantics<parallel>, #tpu.dimension_semantics<arbitrary>], iteration_bounds = array<i64: 1, 1, 1>, scalar_prefetch = 0 : i64, scratch_operands = 0 : i64, tpu.core_type = #tpu.core_type<tc>, window_params = [{transform_indices = @transform_0, window_bounds = array<i64: 16, 32>}, {transform_indices = @transform_1, window_bounds = array<i64: 32, 32>}, {transform_indices = @transform_2, window_bounds = array<i64: 16, 32>}]} {
    %c0_i32 = arith.constant 0 : i32
    %0 = arith.cmpi eq, %arg2, %c0_i32 : i32
    %1 = arith.extui %0 : i1 to i32
    %c0_i32_0 = arith.constant 0 : i32
    %2 = arith.cmpi ne, %1, %c0_i32_0 : i32
    scf.if %2 {
      %cst_8 = arith.constant 0.000000e+00 : f32
      %9 = vector.broadcast %cst_8 : f32 to vector<16x32xf32>
      %c0_9 = arith.constant 0 : index
      %c0_10 = arith.constant 0 : index
      %10 = vector.load %arg5[%c0_9, %c0_10] : memref<16x32xf32, #tpu.memory_space<vmem>>, vector<16x32xf32>
      tpu.vector_store %arg5[%c0_9, %c0_10], %9 {strides = array<i32>} : memref<16x32xf32, #tpu.memory_space<vmem>>, vector<16x32xf32>,
    } else {
    }
    %c0 = arith.constant 0 : index
    %c0_1 = arith.constant 0 : index
    %3 = vector.load %arg5[%c0, %c0_1] : memref<16x32xf32, #tpu.memory_space<vmem>>, vector<16x32xf32>
    %c0_2 = arith.constant 0 : index
    %c0_3 = arith.constant 0 : index
    %4 = vector.load %arg3[%c0_2, %c0_3] : memref<16x32xf32, #tpu.memory_space<vmem>>, vector<16x32xf32>
    %c0_4 = arith.constant 0 : index
    %c0_5 = arith.constant 0 : index
    %5 = vector.load %arg4[%c0_4, %c0_5] : memref<32x32xf32, #tpu.memory_space<vmem>>, vector<32x32xf32>
    %cst = arith.constant dense<0.000000e+00> : vector<16x32xf32>
    %6 = tpu.matmul %4, %5, %cst {dimension_numbers = #tpu.dot_dimension_numbers<[1], [0], [0], [1], [0, 0, 1, 1], [], []>} : vector<16x32xf32>, vector<32x32xf32>, vector<16x32xf32> -> vector<16x32xf32>
    %7 = arith.addf %3, %6 : vector<16x32xf32>
    %c0_6 = arith.constant 0 : index
    %c0_7 = arith.constant 0 : index
    %8 = vector.load %arg5[%c0_6, %c0_7] : memref<16x32xf32, #tpu.memory_space<vmem>>, vector<16x32xf32>
    tpu.vector_store %arg5[%c0_6, %c0_7], %7 {strides = array<i32>} : memref<16x32xf32, #tpu.memory_space<vmem>>, vector<16x32xf32>,
    return
  }
  func.func @transform_0(%arg0: i32, %arg1: i32, %arg2: i32) -> (i32, i32) {
    %c0_i32 = arith.constant 0 : i32
    return %arg0, %arg2 : i32, i32
  }
  func.func @transform_1(%arg0: i32, %arg1: i32, %arg2: i32) -> (i32, i32) {
    %c0_i32 = arith.constant 0 : i32
    return %arg2, %arg1 : i32, i32
  }
  func.func @transform_2(%arg0: i32, %arg1: i32, %arg2: i32) -> (i32, i32) {
    %c0_i32 = arith.constant 0 : i32
    return %arg0, %arg1 : i32, i32
  }
}

</mosaic_0001>

<llo_original>
// kernel: tpu_custom_call.1
$region0: #{tpu_custom_call.1}
  #allocation0 [shape = 'u32[]', space=smem, size = 0x4, offset = 0x4, fixed_abs, tag = 'smem constant byte address 0x4 - core index']
  #allocation1 [shape = 'u32[72,128]{1,0:T(1,128)}', space=vmem, size = 0x9000, scoped, tag = 'internal scratch']
  %s0 = inlined_call_operand.hbm [shape: f32[16,32], index: 0, kind: input, shape index: {}]
  %s1 = inlined_call_operand.hbm [shape: f32[32,32], index: 1, kind: input, shape index: {}]
  %s2 = inlined_call_operand.hbm [shape: f32[16,32], index: 2, kind: output, shape index: {}]
  %s3 = sld [smem:[#allocation0]]
  $region30: #{tpu_custom_call.1} parent=0
    _
  %s5 = ssub.s32 1, %s3
  %s6 = scalar_select 0, %s5, %s3
  $region1: #{tpu_custom_call.1} parent=0
    #allocation2 [shape = 'u8[8192]{0}', space=vmem, size = 0x2000, scoped, tag = 'input window, operand 0, single buffered']
    #allocation3 [shape = 's32[1]{0}', space=sflag, size = 0x4, scoped, tag = 'scoped memory for tpu_custom_call.1']
    #allocation4 [shape = 's32[1]{0}', space=sflag, size = 0x4, scoped, tag = 'scoped memory for tpu_custom_call.1']
    #allocation5 [shape = 'u8[16384]{0}', space=vmem, size = 0x4000, scoped, tag = 'input window, operand 1, single buffered']
    #allocation6 [shape = 's32[1]{0}', space=sflag, size = 0x4, scoped, tag = 'scoped memory for tpu_custom_call.1']
    #allocation7 [shape = 'u8[8192]{0}', space=vmem, size = 0x2000, scoped, tag = 'output window, operand 0, single buffered']
    %7 = vsyncpa [#allocation3], 0
    %8 = vsyncpa [#allocation6], 0
    %9 = vsyncpa [#allocation4], 0
    // Predicated region
    $region2: #{tpu_custom_call.1} parent=1 // pred_check
      _
    $region3: #{tpu_custom_call.1} parent=1 // pred_check_branch
      %11 = sbr.rel (0) target = $region5
    $region4: #{tpu_custom_call.1} parent=1 // pred_region
      %13 = vsyncadd [#allocation3], 0
      %s14 = sshll.u32 %s0, 4
      %s15 = int_to_ptr.hbm [resolvable:$true] %s14
      %s16 = sshll.u32 [#allocation2], 4
      %s17 = int_to_ptr.vmem [resolvable:$true] %s16
      %22 = dma.hbm_to_vmem [thread:$0]  %s15, 256, %s17, [#allocation3], 128, 128, 8
    $region5: #{tpu_custom_call.1} parent=1 // pred_fallthru
      _
    // Predicated region
    $region6: #{tpu_custom_call.1} parent=1 // pred_check
      _
    $region7: #{tpu_custom_call.1} parent=1 // pred_check_branch
      %24 = sbr.rel (0) target = $region9
    $region8: #{tpu_custom_call.1} parent=1 // pred_region
      %26 = vsyncadd [#allocation6], 0
      %s27 = sshll.u32 %s1, 4
      %s28 = int_to_ptr.hbm [resolvable:$true] %s27
      %s29 = sshll.u32 [#allocation5], 4
      %s30 = int_to_ptr.vmem [resolvable:$true] %s29
      %35 = dma.hbm_to_vmem [thread:$0]  %s28, 512, %s30, [#allocation6], 128, 128, 8
    $region9: #{tpu_custom_call.1} parent=1 // pred_fallthru
      _
    // Predicated region
    $region10: #{tpu_custom_call.1} parent=1 // pred_check
      _
    $region11: #{tpu_custom_call.1} parent=1 // pred_check_branch
      %37 = sbr.rel (0) target = $region13
    $region12: #{tpu_custom_call.1} parent=1 // pred_region
      %39 = dma.done [#allocation3], 256
    $region13: #{tpu_custom_call.1} parent=1 // pred_fallthru
      _
    // Predicated region
    $region14: #{tpu_custom_call.1} parent=1 // pred_check
      _
    $region15: #{tpu_custom_call.1} parent=1 // pred_check_branch
      %41 = sbr.rel (0) target = $region17
    $region16: #{tpu_custom_call.1} parent=1 // pred_region
      %43 = dma.done [#allocation6], 512
    $region17: #{tpu_custom_call.1} parent=1 // pred_fallthru
      _
    %p44 = scmp.eq.s32.totalorder 0, 0
    // Predicated region
    $region18: #{tpu_custom_call.1} parent=1 // pred_check
      %p45 = pneg %p44
    $region19: #{tpu_custom_call.1} parent=1 // pred_check_branch
      %47 = sbr.rel (%p45) target = $region21
    $region20: #{tpu_custom_call.1} parent=1 // pred_region
      %vm48 = vcmask 261120
      %49 = vst.msk [vmem:[#allocation7] sm:$0xff] %vm48, 0.0
      %50 = vst.msk [vmem:[#allocation7 + $0x8] sm:$0xff] %vm48, 0.0
    $region21: #{tpu_custom_call.1} parent=1 // pred_fallthru
      _
    %v51 = vld [vmem:[#allocation7] sm:$0xff]
    %v52 = vld [vmem:[#allocation7 + $0x8] sm:$0xff]
    %v53 = vld [vmem:[#allocation2] sm:$0xff]
    %v54 = vld [vmem:[#allocation2 + $0x8] sm:$0xff]
    %v55 = vld [vmem:[#allocation5] sm:$0xff]
    %v56 = vld [vmem:[#allocation5 + $0x8] sm:$0xff]
    %v57 = vld [vmem:[#allocation5 + $0x10] sm:$0xff]
    %v58 = vld [vmem:[#allocation5 + $0x18] sm:$0xff]
    %vm59 = vcmask 261120
    %v61 = vsel %vm59, %v53, 0
    %v64 = vsel %vm59, %v54, 0
    %66 = vmatpush.msra.mxu0 0.0
    %67 = vmatpush.msra.mxu0 0.0
    %68 = vmatpush.msra.mxu0 0.0
    %69 = vmatpush.msra.mxu0 0.0
    %70 = vmatpush.msra.mxu0 0.0
    %71 = vmatpush.msra.mxu0 0.0
    %72 = vmatpush.msra.mxu0 0.0
    %73 = vmatpush.msra.mxu0 0.0
    %74 = vmatpush.msra.mxu0 0.0
    %75 = vmatpush.msra.mxu0 0.0
    %76 = vmatpush.msra.mxu0 0.0
    %77 = vmatpush.msra.mxu0 0.0
    %78 = vmatpush.msra.mxu0 %v58
    %79 = vmatpush.msra.mxu0 %v57
    %80 = vmatpush.msra.mxu0 %v56
    %81 = vmatpush.msra.mxu0 %v55
    %82 = vmatmul.f32.gmra.mxu0 %v61
    %v83 = vpop.f32.mrf.mxu0
    %v84 = vadd.f32 0.0, %v83
    %85 = vmatmul.f32.gmra.mxu0 %v64
    %v86 = vpop.f32.mrf.mxu0
    %v87 = vadd.f32 0.0, %v86
    %88 = vdwg.mxu0
    %v89 = vadd.f32 %v51, %v84
    %v90 = vadd.f32 %v52, %v87
    %91 = vst.msk [vmem:[#allocation7] sm:$0xff] %vm59, %v89
    %92 = vst.msk [vmem:[#allocation7 + $0x8] sm:$0xff] %vm59, %v90
    // Predicated region
    $region22: #{tpu_custom_call.1} parent=1 // pred_check
      _
    $region23: #{tpu_custom_call.1} parent=1 // pred_check_branch
      %94 = sbr.rel (0) target = $region25
    $region24: #{tpu_custom_call.1} parent=1 // pred_region
      %96 = vsyncadd [#allocation4], 0
      %s97 = sshll.u32 [#allocation7], 4
      %s98 = int_to_ptr.vmem [resolvable:$true] %s97
      %s99 = sshll.u32 %s2, 4
      %s100 = int_to_ptr.hbm [resolvable:$true] %s99
      %105 = dma.vmem_to_hbm [thread:$0]  %s98, 256, %s100, [#allocation4], 128, 128, 8
    $region25: #{tpu_custom_call.1} parent=1 // pred_fallthru
      _
    // Predicated region
    $region26: #{tpu_custom_call.1} parent=1 // pred_check
      _
    $region27: #{tpu_custom_call.1} parent=1 // pred_check_branch
      %107 = sbr.rel (0) target = $region29
    $region28: #{tpu_custom_call.1} parent=1 // pred_region
      %109 = dma.done [#allocation4], 256
    $region29: #{tpu_custom_call.1} parent=1 // pred_fallthru
      _
    %110 = vsyncpa [#allocation3], 1
    %111 = vsyncpa [#allocation6], 1
    %112 = vsyncpa [#allocation4], 1

</llo_original>
